<compile_context>
chip_gen: v7x
topology: tpu7x:2x2x1
jax: 0.10.0
libtpu: 0.0.40
codegen_flags: <defaults>
</compile_context>

<pallas_src>
import functools

import jax
import jax.numpy as jnp
from jax import lax
from jax.experimental import pallas as pl
from jax.experimental.pallas import tpu as pltpu


# ----------------------------------------------------------------------------
# Tiled linear kernel: y = x @ w_t + b   (w_t already (d_in, d_out), bf16)
# ----------------------------------------------------------------------------
def _linear_kernel(x_ref, w_ref, b_ref, o_ref, acc_ref):
    # x: (TM, TK), w: (TK, TN) bf16, b: (1, TN) f32, o: (TM, TN); axis 2 is K.
    @pl.when(pl.program_id(2) == 0)
    def _():
        acc_ref[...] = jnp.zeros_like(acc_ref)

    # bf16 x bf16 on the MXU with f32 accumulation (bf16-native on all generations).
    acc_ref[...] += jnp.dot(
        x_ref[...].astype(jnp.bfloat16),
        w_ref[...].astype(jnp.bfloat16),
        preferred_element_type=jnp.float32,
    )

    @pl.when(pl.program_id(2) == pl.num_programs(2) - 1)
    def _():
        o_ref[...] = (acc_ref[...] + b_ref[...]).astype(o_ref.dtype)


# MXU-friendly targets.  With bf16 tiles the double-buffered per-step footprint is
# ~3 MiB -> comfortably under the scoped VMEM default on v5e/v6e and on v7x (64 MiB).
_LIN_TM, _LIN_TN, _LIN_TK = 256, 512, 512


def _pick_tile(dim, target, align):
    """Largest multiple of `align` that divides `dim` and is <= target.

    Falls back to the full dimension only when dim <= target or no aligned divisor
    exists (never silently turns a large non-divisible axis into one giant block
    unless unavoidable)."""
    if dim <= target:
        return dim
    t = (target // align) * align
    while t >= align:
        if dim % t == 0:
            return t
        t -= align
    return dim


def pallas_linear(x2d, w_t, bias, out_dtype=jnp.float32):
    """y = x2d @ w_t + bias  (nn.Linear semantics; w_t is the pre-transposed weight)."""
    n, d_in = x2d.shape
    d_out = w_t.shape[1]
    tm = _pick_tile(n, _LIN_TM, 8)
    tn = _pick_tile(d_out, _LIN_TN, 128)
    tk = _pick_tile(d_in, _LIN_TK, 128)
    b2d = bias.reshape(1, d_out)

    # NOTE: if profiling shows exposed DMA on the K axis, bump the weight BlockSpec
    # to pipeline_mode=pl.Buffered(3) (check VMEM headroom first on v7x).
    return pl.pallas_call(
        _linear_kernel,
        out_shape=jax.ShapeDtypeStruct((n, d_out), out_dtype),
        grid_spec=pltpu.PrefetchScalarGridSpec(
            num_scalar_prefetch=0,
            grid=(n // tm, d_out // tn, d_in // tk),
            in_specs=[
                pl.BlockSpec((tm, tk), lambda i, j, k: (i, k)),
                pl.BlockSpec((tk, tn), lambda i, j, k: (k, j)),
                pl.BlockSpec((1, tn), lambda i, j, k: (0, j)),
            ],
            out_specs=pl.BlockSpec((tm, tn), lambda i, j, k: (i, j)),
            scratch_shapes=[pltpu.VMEM((tm, tn), jnp.float32)],
        ),
        compiler_params=pltpu.CompilerParams(
            dimension_semantics=("parallel", "parallel", "arbitrary")
        ),
    )(x2d, w_t, b2d)


# ----------------------------------------------------------------------------
# Attention kernel: one (batch, Q-tile) per grid step, all heads in-kernel.
# ----------------------------------------------------------------------------
def _attention_kernel(num_heads, depth, with_attn,
                      q_ref, k_ref, v_ref, o_ref, *maybe_a):
    # q: (1, tq, d_model) bf16 (scale pre-folded into WQ), k/v: (1, Sk, d_model) bf16
    # o: (1, tq, d_model) bf16, optional a: (1, H, tq, Sk) f32
    for h in range(num_heads):        # static unroll; head slices stay in VMEM
        lo = h * depth
        # NOTE: depth is not a multiple of 128 here, so head slices/stores are
        # masked; pad heads to 128 lanes for full-vreg accesses at real sizes.
        q_h = q_ref[0, :, lo:lo + depth]
        k_h = k_ref[0, :, lo:lo + depth]
        v_h = v_ref[0, :, lo:lo + depth]
        # scores = q_h @ k_h^T without an explicit transpose (contract on depth);
        # bf16 operands, f32 result on the MXU.
        s = lax.dot_general(
            q_h, k_h,
            dimension_numbers=(((1,), (1,)), ((), ())),
            preferred_element_type=jnp.float32,
        )
        # Softmax math in f32 (v5e has no bf16 VPU/EUP); reciprocal on the EUP slot.
        m = jnp.max(s, axis=-1, keepdims=True)
        e = jnp.exp(s - m)
        p = e * pl.reciprocal(jnp.sum(e, axis=-1, keepdims=True), approx=True)
        if with_attn:
            maybe_a[0][0, h] = p
        ctx_h = jnp.dot(p.astype(jnp.bfloat16), v_h,
                        preferred_element_type=jnp.float32)
        # Direct per-head store into the output column slice: no list+concat, lower
        # vreg pressure, output already in (B, S, H*depth) layout.
        o_ref[0, :, lo:lo + depth] = ctx_h.astype(o_ref.dtype)


def pallas_attention(q, k, v, num_heads, depth, *, return_attention=False,
                     col_blocks=(0, 0, 0)):
    """q: (B, Sq, *); k/v: (B, Sk, *); heads contiguous within a d_model-wide column
    block of the last axis, selected by col_blocks (block width = num_heads*depth).

    Returns (context (B, Sq, d_model) bf16, attention (B, H, Sq, Sk) f32 or None).
    """
    b, sq, _ = q.shape
    sk = k.shape[1]
    d_model = num_heads * depth
    tq = _pick_tile(sq, 256, 8)     # Sq-parallel axis keeps both v7x cores fed
    qb, kb, vb = col_blocks

    kernel = functools.partial(_attention_kernel, num_heads, depth, return_attention)

    out_shapes = [jax.ShapeDtypeStruct((b, sq, d_model), jnp.bfloat16)]
    out_specs = [pl.BlockSpec((1, tq, d_model), lambda i, qi: (i, qi, 0))]
    if return_attention:
        out_shapes.append(jax.ShapeDtypeStruct((b, num_heads, sq, sk), jnp.float32))
        out_specs.append(
            pl.BlockSpec((1, num_heads, tq, sk), lambda i, qi: (i, 0, qi, 0))
        )

    outs = pl.pallas_call(
        kernel,
        out_shape=tuple(out_shapes),
        grid_spec=pltpu.PrefetchScalarGridSpec(
            num_scalar_prefetch=0,
            grid=(b, sq // tq),
            in_specs=[
                pl.BlockSpec((1, tq, d_model), lambda i, qi: (i, qi, qb)),
                pl.BlockSpec((1, sk, d_model), lambda i, qi: (i, 0, kb)),
                pl.BlockSpec((1, sk, d_model), lambda i, qi: (i, 0, vb)),
            ],
            out_specs=tuple(out_specs),
        ),
        compiler_params=pltpu.CompilerParams(
            dimension_semantics=("parallel", "parallel")
        ),
    )(q, k, v)

    if return_attention:
        return outs[0], outs[1]
    return outs[0], None


# ----------------------------------------------------------------------------
# Module: MultiHeadAttention forward
# ----------------------------------------------------------------------------
class MultiHeadAttentionPallas:
    def __init__(self, d_model, num_heads, key):
        assert d_model % num_heads == 0
        self.d_model = d_model
        self.num_heads = num_heads
        self.depth = d_model // num_heads
        ks = jax.random.split(key, 8)
        lim = 1.0 / (float(d_model) ** 0.5)
        scale = 1.0 / (float(self.depth) ** 0.5)

        def init_w(k):
            # Stored pre-transposed, (d_in, d_out): no per-forward weight.T.
            return jax.random.uniform(k, (d_model, d_model), jnp.float32, -lim, lim)

        def init_b(k):
            return jax.random.uniform(k, (d_model,), jnp.float32, -lim, lim)

        # Fold 1/sqrt(depth) into WQ / WQ_b once at init (removes a per-step
        # whole-tile VPU multiply in the attention kernel).
        wq = init_w(ks[0]) * scale
        bq = init_b(ks[1]) * scale
        wk, bk = init_w(ks[2]), init_b(ks[3])
        wv, bv = init_w(ks[4]), init_b(ks[5])

        # bf16 weights: MXU-native, halves HBM + VMEM traffic per tile.
        self.WQ_wt, self.WQ_b = wq.astype(jnp.bfloat16), bq
        self.WK_wt, self.WK_b = wk.astype(jnp.bfloat16), bk
        self.WV_wt, self.WV_b = wv.astype(jnp.bfloat16), bv
        # Fused QKV weights (self-attention fast path: one activation read from HBM).
        self.qkv_wt = jnp.concatenate([self.WQ_wt, self.WK_wt, self.WV_wt], axis=1)
        self.qkv_b = jnp.concatenate([bq, bk, bv])
        self.fc_wt, self.fc_b = init_w(ks[6]).astype(jnp.bfloat16), init_b(ks[7])

    def __call__(self, query, key, value, mask=None, return_attention=True):
        if mask is not None:
            # TODO(synk): masked attention (masked_fill) path not implemented.
            raise NotImplementedError("mask is not supported by the Pallas kernels")

        b, sq, d = query.shape
        sk = key.shape[1]

        # Self-attention fast path: fused (d_model, 3*d_model) projection; the
        # attention kernel consumes the packed (B, S, 3*d_model) tensor directly via
        # lane-aligned column-block indexing (requires d_model % 128 == 0).
        if (query is key) and (key is value) and (d % 128 == 0):
            qkv = pallas_linear(query.reshape(b * sq, d), self.qkv_wt, self.qkv_b,
                                out_dtype=jnp.bfloat16)
            qkv3 = qkv.reshape(b, sq, 3 * d)
            ctx, attn = pallas_attention(
                qkv3, qkv3, qkv3, self.num_heads, self.depth,
                return_attention=return_attention, col_blocks=(0, 1, 2),
            )
        else:
            q = pallas_linear(query.reshape(b * sq, d), self.WQ_wt, self.WQ_b,
                              out_dtype=jnp.bfloat16)
            k = pallas_linear(key.reshape(b * sk, d), self.WK_wt, self.WK_b,
                              out_dtype=jnp.bfloat16)
            v = pallas_linear(value.reshape(b * sk, d), self.WV_wt, self.WV_b,
                              out_dtype=jnp.bfloat16)
            ctx, attn = pallas_attention(
                q.reshape(b, sq, d), k.reshape(b, sk, d), v.reshape(b, sk, d),
                self.num_heads, self.depth, return_attention=return_attention,
            )

        out = pallas_linear(ctx.reshape(b * sq, d), self.fc_wt, self.fc_b,
                            out_dtype=jnp.float32)
        return out.reshape(b, sq, d), attn


# ----------------------------------------------------------------------------
# Pure-JAX reference (mirrors the PyTorch forward; bf16 weights upcast to f32,
# and the 1/sqrt(depth) scale is pre-folded into WQ so there is no /sqrt here).
# ----------------------------------------------------------------------------
def reference_forward(mha, query, key, value):
    b, sq, d = query.shape
    h, dep = mha.num_heads, mha.depth
    wq = mha.WQ_wt.astype(jnp.float32)
    wk = mha.WK_wt.astype(jnp.float32)
    wv = mha.WV_wt.astype(jnp.float32)
    wf = mha.fc_wt.astype(jnp.float32)
    q = query @ wq + mha.WQ_b
    k = key @ wk + mha.WK_b
    v = value @ wv + mha.WV_b
    q = q.reshape(b, sq, h, dep).transpose(0, 2, 1, 3)
    k = k.reshape(b, -1, h, dep).transpose(0, 2, 1, 3)
    v = v.reshape(b, -1, h, dep).transpose(0, 2, 1, 3)
    scores = jnp.einsum("bhqd,bhkd->bhqk", q, k)   # scale already folded into WQ
    attn = jax.nn.softmax(scores, axis=-1)
    out = jnp.einsum("bhqk,bhkd->bhqd", attn, v)
    out = out.transpose(0, 2, 1, 3).reshape(b, sq, h * dep)
    out = out @ wf + mha.fc_b
    return out, attn


if __name__ == "__main__":
    B, S, D_MODEL, NUM_HEADS = 2, 8, 128, 4

    root = jax.random.PRNGKey(0)
    k_param, k_q, k_k, k_v = jax.random.split(root, 4)

    mha = MultiHeadAttentionPallas(D_MODEL, NUM_HEADS, k_param)

    query = jax.random.normal(k_q, (B, S, D_MODEL), jnp.float32)
    key = jax.random.normal(k_k, (B, S, D_MODEL), jnp.float32)
    value = jax.random.normal(k_v, (B, S, D_MODEL), jnp.float32)

    # bf16-on-MXU (f32 accumulation) -> widened tolerances vs the f32 reference.
    ATOL = RTOL = 3e-2

    # 1) Self-attention: exercises the fused-QKV projection fast path.
    out_sa, attn_sa = mha(query, query, query)
    out_sa = jax.block_until_ready(out_sa)
    attn_sa = jax.block_until_ready(attn_sa)
    ref_out_sa, ref_attn_sa = reference_forward(mha, query, query, query)
    assert out_sa.shape == (B, S, D_MODEL)
    assert attn_sa.shape == (B, NUM_HEADS, S, S)
    assert jnp.allclose(out_sa, ref_out_sa, atol=ATOL, rtol=RTOL)
    assert jnp.allclose(attn_sa, ref_attn_sa, atol=ATOL, rtol=RTOL)

    # 2) Cross-attention: exercises the separate Q/K/V projection path.
    out_ca, attn_ca = mha(query, key, value)
    out_ca = jax.block_until_ready(out_ca)
    attn_ca = jax.block_until_ready(attn_ca)
    ref_out_ca, ref_attn_ca = reference_forward(mha, query, key, value)
    assert jnp.allclose(out_ca, ref_out_ca, atol=ATOL, rtol=RTOL)
    assert jnp.allclose(attn_ca, ref_attn_ca, atol=ATOL, rtol=RTOL)

    # 3) Bandwidth-friendly path: skip the O(S^2) attention-prob writeback.
    out_nr, attn_nr = mha(query, key, value, return_attention=False)
    out_nr = jax.block_until_ready(out_nr)
    assert attn_nr is None
    assert jnp.allclose(out_nr, ref_out_ca, atol=ATOL, rtol=RTOL)

    print("KERNEL_OK")
</pallas_src>

<mosaic_0001>
module attributes {stable_mosaic.version = 11 : i64} {
  func.func @_linear_kernel(%arg0: i32, %arg1: i32, %arg2: i32, %arg3: memref<16x128xf32, #tpu.memory_space<vmem>>, %arg4: memref<128x384xbf16, #tpu.memory_space<vmem>>, %arg5: memref<1x384xf32, #tpu.memory_space<vmem>>, %arg6: memref<16x384xbf16, #tpu.memory_space<vmem>>, %arg7: memref<16x384xf32, #tpu.memory_space<vmem>>) attributes {dimension_semantics = [#tpu.dimension_semantics<parallel>, #tpu.dimension_semantics<parallel>, #tpu.dimension_semantics<arbitrary>], iteration_bounds = array<i64: 1, 1, 1>, scalar_prefetch = 0 : i64, scratch_operands = 1 : i64, tpu.core_type = #tpu.core_type<tc>, window_params = [{transform_indices = @transform_0, window_bounds = array<i64: 16, 128>}, {transform_indices = @transform_1, window_bounds = array<i64: 128, 384>}, {transform_indices = @transform_2, window_bounds = array<i64: 1, 384>}, {transform_indices = @transform_3, window_bounds = array<i64: 16, 384>}]} {
    %c0_i32 = arith.constant 0 : i32
    %0 = arith.cmpi eq, %arg2, %c0_i32 : i32
    %1 = arith.extui %0 : i1 to i32
    %c0_i32_0 = arith.constant 0 : i32
    %2 = arith.cmpi ne, %1, %c0_i32_0 : i32
    scf.if %2 {
      %cst_10 = arith.constant 0.000000e+00 : f32
      %13 = vector.broadcast %cst_10 : f32 to vector<16x384xf32>
      %c0_11 = arith.constant 0 : index
      %c0_12 = arith.constant 0 : index
      %14 = vector.load %arg7[%c0_11, %c0_12] : memref<16x384xf32, #tpu.memory_space<vmem>>, vector<16x384xf32>
      tpu.vector_store %arg7[%c0_11, %c0_12], %13 {strides = array<i32>} : memref<16x384xf32, #tpu.memory_space<vmem>>, vector<16x384xf32>,
    } else {
    }
    %c0 = arith.constant 0 : index
    %c0_1 = arith.constant 0 : index
    %3 = vector.load %arg7[%c0, %c0_1] : memref<16x384xf32, #tpu.memory_space<vmem>>, vector<16x384xf32>
    %c0_2 = arith.constant 0 : index
    %c0_3 = arith.constant 0 : index
    %4 = vector.load %arg3[%c0_2, %c0_3] : memref<16x128xf32, #tpu.memory_space<vmem>>, vector<16x128xf32>
    %5 = arith.truncf %4 : vector<16x128xf32> to vector<16x128xbf16>
    %c0_4 = arith.constant 0 : index
    %c0_5 = arith.constant 0 : index
    %6 = vector.load %arg4[%c0_4, %c0_5] : memref<128x384xbf16, #tpu.memory_space<vmem>>, vector<128x384xbf16>
    %cst = arith.constant dense<0.000000e+00> : vector<16x384xf32>
    %7 = tpu.matmul %5, %6, %cst {dimension_numbers = #tpu.dot_dimension_numbers<[1], [0], [0], [1], [0, 0, 1, 1], [], []>} : vector<16x128xbf16>, vector<128x384xbf16>, vector<16x384xf32> -> vector<16x384xf32>
    %8 = arith.addf %3, %7 : vector<16x384xf32>
    %c0_6 = arith.constant 0 : index
    %c0_7 = arith.constant 0 : index
    %9 = vector.load %arg7[%c0_6, %c0_7] : memref<16x384xf32, #tpu.memory_space<vmem>>, vector<16x384xf32>
    tpu.vector_store %arg7[%c0_6, %c0_7], %8 {strides = array<i32>} : memref<16x384xf32, #tpu.memory_space<vmem>>, vector<16x384xf32>,
    %c0_i32_8 = arith.constant 0 : i32
    %10 = arith.cmpi eq, %arg2, %c0_i32_8 : i32
    %11 = arith.extui %10 : i1 to i32
    %c0_i32_9 = arith.constant 0 : i32
    %12 = arith.cmpi ne, %11, %c0_i32_9 : i32
    scf.if %12 {
      %c0_10 = arith.constant 0 : index
      %c0_11 = arith.constant 0 : index
      %13 = vector.load %arg7[%c0_10, %c0_11] : memref<16x384xf32, #tpu.memory_space<vmem>>, vector<16x384xf32>
      %c0_12 = arith.constant 0 : index
      %c0_13 = arith.constant 0 : index
      %14 = vector.load %arg5[%c0_12, %c0_13] : memref<1x384xf32, #tpu.memory_space<vmem>>, vector<1x384xf32>
      %15 = vector.broadcast %14 : vector<1x384xf32> to vector<16x384xf32>
      %16 = arith.addf %13, %15 : vector<16x384xf32>
      %17 = arith.truncf %16 : vector<16x384xf32> to vector<16x384xbf16>
      %c0_14 = arith.constant 0 : index
      %c0_15 = arith.constant 0 : index
      %18 = vector.load %arg6[%c0_14, %c0_15] : memref<16x384xbf16, #tpu.memory_space<vmem>>, vector<16x384xbf16>
      tpu.vector_store %arg6[%c0_14, %c0_15], %17 {strides = array<i32>} : memref<16x384xbf16, #tpu.memory_space<vmem>>, vector<16x384xbf16>,
    } else {
    }
    return
  }
  func.func @transform_0(%arg0: i32, %arg1: i32, %arg2: i32) -> (i32, i32) {
    %c0_i32 = arith.constant 0 : i32
    return %arg0, %arg2 : i32, i32
  }
  func.func @transform_1(%arg0: i32, %arg1: i32, %arg2: i32) -> (i32, i32) {
    %c0_i32 = arith.constant 0 : i32
    return %arg2, %arg1 : i32, i32
  }
  func.func @transform_2(%arg0: i32, %arg1: i32, %arg2: i32) -> (i32, i32) {
    %c0_i32 = arith.constant 0 : i32
    %c0_i32_0 = arith.constant 0 : i32
    return %c0_i32, %arg1 : i32, i32
  }
  func.func @transform_3(%arg0: i32, %arg1: i32, %arg2: i32) -> (i32, i32) {
    %c0_i32 = arith.constant 0 : i32
    return %arg0, %arg1 : i32, i32
  }
}

</mosaic_0001>

<llo_original>
// kernel: tpu_custom_call.1
$region0: #{tpu_custom_call.1}
  #allocation0 [shape = 'u32[]', space=smem, size = 0x4, offset = 0x4, fixed_abs, tag = 'smem constant byte address 0x4 - core index']
  #allocation1 [shape = 'u32[144,128]{1,0:T(1,128)}', space=vmem, size = 0x12000, scoped, tag = 'internal scratch']
  #allocation2 [shape = 'f32[16,384]{1,0:T(8,128)}', space=vmem, size = 0x6000, scoped, tag = 'scratch operand']
  %s0 = inlined_call_operand.hbm [shape: f32[16,128], index: 0, kind: input, shape index: {}]
  %s1 = inlined_call_operand.hbm [shape: bf16[128,384], index: 1, kind: input, shape index: {}]
  %s2 = inlined_call_operand.vmem [shape: f32[1,384], index: 2, kind: input, shape index: {}]
  %s3 = inlined_call_operand.hbm [shape: bf16[16,384], index: 3, kind: output, shape index: {}]
  %s4 = sld [smem:[#allocation0]]
  $region38: #{tpu_custom_call.1} parent=0
    _
  %s6 = ssub.s32 1, %s4
  %s7 = scalar_select 0, %s6, %s4
  $region1: #{tpu_custom_call.1} parent=0
    #allocation3 [shape = 'u8[8192]{0}', space=vmem, size = 0x2000, scoped, tag = 'input window, operand 0, single buffered']
    #allocation4 [shape = 's32[1]{0}', space=sflag, size = 0x4, scoped, tag = 'scoped memory for tpu_custom_call.1']
    #allocation5 [shape = 's32[1]{0}', space=sflag, size = 0x4, scoped, tag = 'scoped memory for tpu_custom_call.1']
    #allocation6 [shape = 'u8[98304]{0}', space=vmem, size = 0x18000, scoped, tag = 'input window, operand 1, single buffered']
    #allocation7 [shape = 's32[1]{0}', space=sflag, size = 0x4, scoped, tag = 'scoped memory for tpu_custom_call.1']
    #allocation8 [shape = 'u8[12288]{0}', space=vmem, size = 0x3000, scoped, tag = 'output window, operand 0, single buffered']
    %8 = vsyncpa [#allocation4], 0
    %9 = vsyncpa [#allocation7], 0
    %10 = vsyncpa [#allocation5], 0
    // Predicated region
    $region2: #{tpu_custom_call.1} parent=1 // pred_check
      _
    $region3: #{tpu_custom_call.1} parent=1 // pred_check_branch
      %12 = sbr.rel (0) target = $region5
    $region4: #{tpu_custom_call.1} parent=1 // pred_region
      %s14 = ssub.s32 256, 256
      %15 = vsyncadd [#allocation4], %s14
      %s16 = sshll.u32 [#allocation3], 4
      %s17 = int_to_ptr.vmem [resolvable:$true] %s16
      %22 = dma.hbm_to_vmem [thread:$0]  %s0, 256, %s17, [#allocation4], 128, 128, 8
    $region5: #{tpu_custom_call.1} parent=1 // pred_fallthru
      _
    // Predicated region
    $region6: #{tpu_custom_call.1} parent=1 // pred_check
      _
    $region7: #{tpu_custom_call.1} parent=1 // pred_check_branch
      %24 = sbr.rel (0) target = $region9
    $region8: #{tpu_custom_call.1} parent=1 // pred_region
      %s26 = ssub.s32 3072, 3072
      %27 = vsyncadd [#allocation7], %s26
      %s28 = sshll.u32 [#allocation6], 4
      %s29 = int_to_ptr.vmem [resolvable:$true] %s28
      %34 = dma.hbm_to_vmem [thread:$0]  %s1, 3072, %s29, [#allocation7], 192, 192, 12
    $region9: #{tpu_custom_call.1} parent=1 // pred_fallthru
      _
    // Predicated region
    $region10: #{tpu_custom_call.1} parent=1 // pred_check
      _
    $region11: #{tpu_custom_call.1} parent=1 // pred_check_branch
      %36 = sbr.rel (0) target = $region13
    $region12: #{tpu_custom_call.1} parent=1 // pred_region
      _
    $region13: #{tpu_custom_call.1} parent=1 // pred_fallthru
      _
    // Predicated region
    $region14: #{tpu_custom_call.1} parent=1 // pred_check
      _
    $region15: #{tpu_custom_call.1} parent=1 // pred_check_branch
      %38 = sbr.rel (0) target = $region17
    $region16: #{tpu_custom_call.1} parent=1 // pred_region
      %39 = dma.done [#allocation4], 256
    $region17: #{tpu_custom_call.1} parent=1 // pred_fallthru
      _
    // Predicated region
    $region18: #{tpu_custom_call.1} parent=1 // pred_check
      _
    $region19: #{tpu_custom_call.1} parent=1 // pred_check_branch
      %41 = sbr.rel (0) target = $region21
    $region20: #{tpu_custom_call.1} parent=1 // pred_region
      %42 = dma.done [#allocation7], 3072
    $region21: #{tpu_custom_call.1} parent=1 // pred_fallthru
      _
    %p44 = scmp.eq.s32.totalorder 0, 0
    // Predicated region
    $region22: #{tpu_custom_call.1} parent=1 // pred_check
      %p45 = pneg %p44
    $region23: #{tpu_custom_call.1} parent=1 // pred_check_branch
      %47 = sbr.rel (%p45) target = $region25
    $region24: #{tpu_custom_call.1} parent=1 // pred_region
      %48 = vst [vmem:[#allocation2] sm:$0xff] 0.0
      %49 = vst [vmem:[#allocation2 + $0x8] sm:$0xff] 0.0
      %50 = vst [vmem:[#allocation2 + $0x10] sm:$0xff] 0.0
      %51 = vst [vmem:[#allocation2 + $0x18] sm:$0xff] 0.0
      %52 = vst [vmem:[#allocation2 + $0x20] sm:$0xff] 0.0
      %53 = vst [vmem:[#allocation2 + $0x28] sm:$0xff] 0.0
    $region25: #{tpu_custom_call.1} parent=1 // pred_fallthru
      _
    %v54 = vld [vmem:[#allocation2] sm:$0xff]
    %v55 = vld [vmem:[#allocation2 + $0x8] sm:$0xff]
    %v56 = vld [vmem:[#allocation2 + $0x10] sm:$0xff]
    %v57 = vld [vmem:[#allocation2 + $0x18] sm:$0xff]
    %v58 = vld [vmem:[#allocation2 + $0x20] sm:$0xff]
    %v59 = vld [vmem:[#allocation2 + $0x28] sm:$0xff]
    %v60 = vld [vmem:[#allocation3] sm:$0xff]
    %v61 = vld [vmem:[#allocation3 + $0x8] sm:$0xff]
    %v62 = vpack.c.bf16 %v61, %v60
    %v63 = vld [vmem:[#allocation6] sm:$0xff]
    %v64 = vld [vmem:[#allocation6 + $0x8] sm:$0xf]
    %v65 = vld [vmem:[#allocation6 + $0xc] sm:$0xff]
    %v66 = vld [vmem:[#allocation6 + $0x14] sm:$0xf]
    %v67 = vld [vmem:[#allocation6 + $0x18] sm:$0xff]
    %v68 = vld [vmem:[#allocation6 + $0x20] sm:$0xf]
    %v69 = vld [vmem:[#allocation6 + $0x24] sm:$0xff]
    %v70 = vld [vmem:[#allocation6 + $0x2c] sm:$0xf]
    %v71 = vld [vmem:[#allocation6 + $0x30] sm:$0xff]
    %v72 = vld [vmem:[#allocation6 + $0x38] sm:$0xf]
    %v73 = vld [vmem:[#allocation6 + $0x3c] sm:$0xff]
    %v74 = vld [vmem:[#allocation6 + $0x44] sm:$0xf]
    %v75 = vld [vmem:[#allocation6 + $0x48] sm:$0xff]
    %v76 = vld [vmem:[#allocation6 + $0x50] sm:$0xf]
    %v77 = vld [vmem:[#allocation6 + $0x54] sm:$0xff]
    %v78 = vld [vmem:[#allocation6 + $0x5c] sm:$0xf]
    %v79 = vld [vmem:[#allocation6 + $0x60] sm:$0xff]
    %v80 = vld [vmem:[#allocation6 + $0x68] sm:$0xf]
    %v81 = vld [vmem:[#allocation6 + $0x6c] sm:$0xff]
    %v82 = vld [vmem:[#allocation6 + $0x74] sm:$0xf]
    %v83 = vld [vmem:[#allocation6 + $0x78] sm:$0xff]
    %v84 = vld [vmem:[#allocation6 + $0x80] sm:$0xf]
    %v85 = vld [vmem:[#allocation6 + $0x84] sm:$0xff]
    %v86 = vld [vmem:[#allocation6 + $0x8c] sm:$0xf]
    %v87 = vld [vmem:[#allocation6 + $0x90] sm:$0xff]
    %v88 = vld [vmem:[#allocation6 + $0x98] sm:$0xf]
    %v89 = vld [vmem:[#allocation6 + $0x9c] sm:$0xff]
    %v90 = vld [vmem:[#allocation6 + $0xa4] sm:$0xf]
    %v91 = vld [vmem:[#allocation6 + $0xa8] sm:$0xff]
    %v92 = vld [vmem:[#allocation6 + $0xb0] sm:$0xf]
    %v93 = vld [vmem:[#allocation6 + $0xb4] sm:$0xff]
    %v94 = vld [vmem:[#allocation6 + $0xbc] sm:$0xf]
    %v127 = vunpack.c.l.b16 %v63
    %v128 = vunpack.c.h.b16 %v63
    %v129 = vunpack.c.l.b16 %v64
    %v130 = vunpack.c.l.b16 %v65
    %v131 = vunpack.c.h.b16 %v65
    %v132 = vunpack.c.l.b16 %v66
    %v133 = vunpack.c.l.b16 %v67
    %v134 = vunpack.c.h.b16 %v67
    %v135 = vunpack.c.l.b16 %v68
    %v136 = vunpack.c.l.b16 %v69
    %v137 = vunpack.c.h.b16 %v69
    %v138 = vunpack.c.l.b16 %v70
    %v139 = vunpack.c.l.b16 %v71
    %v140 = vunpack.c.h.b16 %v71
    %v141 = vunpack.c.l.b16 %v72
    %v142 = vunpack.c.l.b16 %v73
    %v143 = vunpack.c.h.b16 %v73
    %v144 = vunpack.c.l.b16 %v74
    %v145 = vunpack.c.l.b16 %v75
    %v146 = vunpack.c.h.b16 %v75
    %v147 = vunpack.c.l.b16 %v76
    %v148 = vunpack.c.l.b16 %v77
    %v149 = vunpack.c.h.b16 %v77
    %v150 = vunpack.c.l.b16 %v78
    %v151 = vunpack.c.l.b16 %v79
    %v152 = vunpack.c.h.b16 %v79
    %v153 = vunpack.c.l.b16 %v80
    %v154 = vunpack.c.l.b16 %v81
    %v155 = vunpack.c.h.b16 %v81
    %v156 = vunpack.c.l.b16 %v82
    %v157 = vunpack.c.l.b16 %v83
    %v158 = vunpack.c.h.b16 %v83
    %v159 = vunpack.c.l.b16 %v84
    %v160 = vunpack.c.l.b16 %v85
    %v161 = vunpack.c.h.b16 %v85
    %v162 = vunpack.c.l.b16 %v86
    %v163 = vunpack.c.l.b16 %v87
    %v164 = vunpack.c.h.b16 %v87
    %v165 = vunpack.c.l.b16 %v88
    %v166 = vunpack.c.l.b16 %v89
    %v167 = vunpack.c.h.b16 %v89
    %v168 = vunpack.c.l.b16 %v90
    %v169 = vunpack.c.l.b16 %v91
    %v170 = vunpack.c.h.b16 %v91
    %v171 = vunpack.c.l.b16 %v92
    %v172 = vunpack.c.l.b16 %v93
    %v173 = vunpack.c.h.b16 %v93
    %v174 = vunpack.c.l.b16 %v94
    %v175 = vpack.c.b16 %v130, %v127
    %v176 = vpack.c.b16 %v131, %v128
    %v177 = vpack.c.b16 %v132, %v129
    %v178 = vpack.c.b16 %v136, %v133
    %v179 = vpack.c.b16 %v137, %v134
    %v180 = vpack.c.b16 %v138, %v135
    %v181 = vpack.c.b16 %v142, %v139
    %v182 = vpack.c.b16 %v143, %v140
    %v183 = vpack.c.b16 %v144, %v141
    %v184 = vpack.c.b16 %v148, %v145
    %v185 = vpack.c.b16 %v149, %v146
    %v186 = vpack.c.b16 %v150, %v147
    %v187 = vpack.c.b16 %v154, %v151
    %v188 = vpack.c.b16 %v155, %v152
    %v189 = vpack.c.b16 %v156, %v153
    %v190 = vpack.c.b16 %v160, %v157
    %v191 = vpack.c.b16 %v161, %v158
    %v192 = vpack.c.b16 %v162, %v159
    %v193 = vpack.c.b16 %v166, %v163
    %v194 = vpack.c.b16 %v167, %v164
    %v195 = vpack.c.b16 %v168, %v165
    %v196 = vpack.c.b16 %v172, %v169
    %v197 = vpack.c.b16 %v173, %v170
    %v198 = vpack.c.b16 %v174, %v171
    %223 = vmatprep.subr.bf16.mxu0 %v176
    %224 = vmatpush1.bf16.msra.mxu0 %v175
    %225 = vmatprep.subr.bf16.mxu0 %v179
    %226 = vmatpush1.bf16.msra.mxu0 %v178
    %227 = vmatprep.subr.bf16.mxu0 %v182
    %228 = vmatpush1.bf16.msra.mxu0 %v181
    %229 = vmatprep.subr.bf16.mxu0 %v185
    %230 = vmatpush1.bf16.msra.mxu0 %v184
    %231 = vmatprep.subr.bf16.mxu0 %v188
    %232 = vmatpush1.bf16.msra.mxu0 %v187
    %233 = vmatprep.subr.bf16.mxu0 %v191
    %234 = vmatpush1.bf16.msra.mxu0 %v190
    %235 = vmatprep.subr.bf16.mxu0 %v194
    %236 = vmatpush1.bf16.msra.mxu0 %v193
    %237 = vmatprep.subr.bf16.mxu0 %v197
    %238 = vmatpush1.bf16.msra.mxu0 %v196
    %239 = vmatprep.subr.bf16.mxu0 0
    %240 = vmatpush1.bf16.msra.mxu0 0
    %241 = vmatprep.subr.bf16.mxu0 0
    %242 = vmatpush1.bf16.msra.mxu0 0
    %243 = vmatprep.subr.bf16.mxu0 0
    %244 = vmatpush1.bf16.msra.mxu0 0
    %245 = vmatprep.subr.bf16.mxu0 0
    %246 = vmatpush1.bf16.msra.mxu0 0
    %247 = vmatprep.subr.bf16.mxu0 0
    %248 = vmatpush1.bf16.msra.mxu0 0
    %249 = vmatprep.subr.bf16.mxu0 0
    %250 = vmatpush1.bf16.msra.mxu0 0
    %251 = vmatprep.subr.bf16.mxu0 0
    %252 = vmatpush1.bf16.msra.mxu0 0
    %253 = vmatprep.subr.bf16.mxu0 0
    %254 = vmatpush1.bf16.msra.mxu0 0
    %255 = vmatprep.mubr.bf16.mxu0 0
    %256 = vmatmul.mubr.bf16.gmra.mrb[0].mxu0 %v62
    %v257 = vpop.f32.mrb[0].mxu0
    %v258 = vadd.f32 0.0, %v257
    %v259 = vpop.f32.mrb[0].mxu0
    %v260 = vadd.f32 0.0, %v259
    %v261 = vpop.f32.mrb[0].mxu0
    %v262 = vadd.f32 0.0, %v261
    %v263 = vpop.f32.mrb[0].mxu0
    %v264 = vadd.f32 0.0, %v263
    %265 = vdwg.mxu0
    %266 = vmatprep.subr.bf16.mxu0 0
    %267 = vmatpush1.bf16.msra.mxu0 %v177
    %268 = vmatprep.subr.bf16.mxu0 0
    %269 = vmatpush1.bf16.msra.mxu0 %v180
    %270 = vmatprep.subr.bf16.mxu0 0
    %271 = vmatpush1.bf16.msra.mxu0 %v183
    %272 = vmatprep.subr.bf16.mxu0 0
    %273 = vmatpush1.bf16.msra.mxu0 %v186
    %274 = vmatprep.subr.bf16.mxu0 0
    %275 = vmatpush1.bf16.msra.mxu0 %v189
    %276 = vmatprep.subr.bf16.mxu0 0
    %277 = vmatpush1.bf16.msra.mxu0 %v192
    %278 = vmatprep.subr.bf16.mxu0 0
    %279 = vmatpush1.bf16.msra.mxu0 %v195
    %280 = vmatprep.subr.bf16.mxu0 0
    %281 = vmatpush1.bf16.msra.mxu0 %v198
    %282 = vmatprep.subr.bf16.mxu0 0
    %283 = vmatpush1.bf16.msra.mxu0 0
    %284 = vmatprep.subr.bf16.mxu0 0
    %285 = vmatpush1.bf16.msra.mxu0 0
    %286 = vmatprep.subr.bf16.mxu0 0
    %287 = vmatpush1.bf16.msra.mxu0 0
    %288 = vmatprep.subr.bf16.mxu0 0
    %289 = vmatpush1.bf16.msra.mxu0 0
    %290 = vmatprep.subr.bf16.mxu0 0
    %291 = vmatpush1.bf16.msra.mxu0 0
    %292 = vmatprep.subr.bf16.mxu0 0
    %293 = vmatpush1.bf16.msra.mxu0 0
    %294 = vmatprep.subr.bf16.mxu0 0
    %295 = vmatpush1.bf16.msra.mxu0 0
    %296 = vmatprep.subr.bf16.mxu0 0
    %297 = vmatpush1.bf16.msra.mxu0 0
    %298 = vmatprep.mubr.bf16.mxu0 0
    %299 = vmatmul.mubr.bf16.gmra.mrb[0].mxu0 %v62
    %v300 = vpop.f32.mrb[0].mxu0
    %v301 = vadd.f32 0.0, %v300
    %v302 = vpop.f32.mrb[0].mxu0
    %v303 = vpop.f32.mrb[0].mxu0
    %v304 = vadd.f32 0.0, %v303
    %v305 = vpop.f32.mrb[0].mxu0
    %306 = vdwg.mxu0
    %v307 = vadd.f32 %v54, %v258
    %v308 = vadd.f32 %v55, %v260
    %v309 = vadd.f32 %v56, %v301
    %v310 = vadd.f32 %v57, %v262
    %v311 = vadd.f32 %v58, %v264
    %v312 = vadd.f32 %v59, %v304
    %313 = vst [vmem:[#allocation2] sm:$0xff] %v307
    %314 = vst [vmem:[#allocation2 + $0x8] sm:$0xff] %v308
    %315 = vst [vmem:[#allocation2 + $0x10] sm:$0xff] %v309
    %316 = vst [vmem:[#allocation2 + $0x18] sm:$0xff] %v310
    %317 = vst [vmem:[#allocation2 + $0x20] sm:$0xff] %v311
    %318 = vst [vmem:[#allocation2 + $0x28] sm:$0xff] %v312
    // Predicated region
    $region26: #{tpu_custom_call.1} parent=1 // pred_check
      %p319 = pneg %p44
    $region27: #{tpu_custom_call.1} parent=1 // pred_check_branch
      %321 = sbr.rel (%p319) target = $region29
    $region28: #{tpu_custom_call.1} parent=1 // pred_region
      %v322 = vld [vmem:[#allocation2] sm:$0xff]
      %v323 = vld [vmem:[#allocation2 + $0x8] sm:$0xff]
      %v324 = vld [vmem:[#allocation2 + $0x10] sm:$0xff]
      %v325 = vld [vmem:[#allocation2 + $0x18] sm:$0xff]
      %v326 = vld [vmem:[#allocation2 + $0x20] sm:$0xff]
      %v327 = vld [vmem:[#allocation2 + $0x28] sm:$0xff]
      %v328 = vld [vmem:[%s2] sm:$0x7]
      %v330 = vlaneseq
      %v331 = vshrl.u32 %v330, 7
      %v332 = vsub.s32 0, %v331
      %v333 = vrot.slane %v328, %v332
      %v334 = vlaneseq
      %v335 = vshrl.u32 %v334, 7
      %v336 = vsub.s32 1, %v335
      %v337 = vrot.slane %v328, %v336
      %v338 = vlaneseq
      %v339 = vshrl.u32 %v338, 7
      %v340 = vsub.s32 2, %v339
      %v341 = vrot.slane %v328, %v340
      %v345 = vadd.f32 %v322, %v333
      %v346 = vadd.f32 %v323, %v337
      %v347 = vadd.f32 %v324, %v341
      %v348 = vadd.f32 %v325, %v333
      %v349 = vadd.f32 %v326, %v337
      %v350 = vadd.f32 %v327, %v341
      %v351 = vpack.c.bf16 %v348, %v345
      %v352 = vpack.c.bf16 %v349, %v346
      %v353 = vpack.c.bf16 %v350, %v347
      %v357 = vunpack.c.l.b16 %v351
      %v358 = vunpack.c.l.b16 %v352
      %v359 = vunpack.c.l.b16 %v353
      %v360 = vunpack.c.h.b16 %v351
      %v361 = vunpack.c.h.b16 %v352
      %v362 = vunpack.c.h.b16 %v353
      %v363 = vpack.c.b16 %v358, %v357
      %v364 = vpack.c.b16 %v359, %v359
      %v365 = vpack.c.b16 %v361, %v360
      %v366 = vpack.c.b16 %v362, %v362
      %371 = vst [vmem:[#allocation8] sm:$0xff] %v363
      %372 = vst [vmem:[#allocation8 + $0x8] sm:$0xf] %v364
      %373 = vst [vmem:[#allocation8 + $0xc] sm:$0xff] %v365
      %374 = vst [vmem:[#allocation8 + $0x14] sm:$0xf] %v366
    $region29: #{tpu_custom_call.1} parent=1 // pred_fallthru
      _
    // Predicated region
    $region30: #{tpu_custom_call.1} parent=1 // pred_check
      _
    $region31: #{tpu_custom_call.1} parent=1 // pred_check_branch
      %376 = sbr.rel (0) target = $region33
    $region32: #{tpu_custom_call.1} parent=1 // pred_region
      %s378 = ssub.s32 384, 384
      %379 = vsyncadd [#allocation5], %s378
      %s380 = sshll.u32 [#allocation8], 4
      %s381 = int_to_ptr.vmem [resolvable:$true] %s380
      %386 = dma.vmem_to_hbm [thread:$0]  %s381, 384, %s3, [#allocation5], 192, 192, 12
    $region33: #{tpu_custom_call.1} parent=1 // pred_fallthru
      _
    // Predicated region
    $region34: #{tpu_custom_call.1} parent=1 // pred_check
      _
    $region35: #{tpu_custom_call.1} parent=1 // pred_check_branch
      %388 = sbr.rel (0) target = $region37
    $region36: #{tpu_custom_call.1} parent=1 // pred_region
      %389 = dma.done [#allocation5], 384
    $region37: #{tpu_custom_call.1} parent=1 // pred_fallthru
      _
    %390 = vsyncpa [#allocation4], 1
    %391 = vsyncpa [#allocation7], 1
    %392 = vsyncpa [#allocation5], 1

</llo_original>
